<compile_context>
chip_gen: v6e
topology: v6e:2x2x1
jax: 0.10.0
libtpu: 0.0.40
codegen_flags: <defaults>
</compile_context>

<pallas_src>
import functools

import jax
import jax.numpy as jnp
from jax import lax
from jax.experimental import pallas as pl
from jax.experimental.pallas import tpu as pltpu

_HEAD_ROWS = 8       # head weight rows padded to one sublane tile (row 0 is real)
_F32_BYTES = 4


def _make_mlp_kernel(n_hidden):
    """Fused eval-mode MLP: n_hidden x (Linear + ReLU) then a 1-wide linear head.

    Ref order: x, (w, b) * n_hidden, w_head, b_head, o.
    Dropout layers are identity in eval mode and are omitted.
    The head is computed batch-in-lanes: (8, n_last) . (tb, n_last)^T -> (8, tb),
    so the batch lands on lanes and the output store is lane-dense.
    """

    def kernel(*refs):
        x_ref = refs[0]
        o_ref = refs[-1]
        h = x_ref[...]
        for l in range(n_hidden):
            w_ref = refs[1 + 2 * l]
            b_ref = refs[2 + 2 * l]
            h = jnp.dot(h, w_ref[...], preferred_element_type=jnp.float32) + b_ref[...]
            h = jnp.maximum(h, 0.0)          # ReLU (dropout = identity, eval)
        wo_ref = refs[1 + 2 * n_hidden]      # (8, n_last), row 0 real
        bo_ref = refs[2 + 2 * n_hidden]      # (8, 1)
        head = lax.dot_general(              # NT matmul: contract last-with-last
            wo_ref[...], h,
            dimension_numbers=(((1,), (1,)), ((), ())),
            preferred_element_type=jnp.float32)           # (8, tb)
        o_ref[...] = head + bo_ref[...]

    return kernel


def _round_up(x, m):
    return ((x + m - 1) // m) * m


@functools.partial(jax.jit, static_argnames=("block_b",))
def net_dropout_forward(x, hidden_params, out_params, *, block_b=1024):
    """Forward pass of Net_dropout (eval mode).

    Args:
      x: [B, dim] input.
      hidden_params: tuple of (w, b) pairs, w: [in, out], b: [1, out].
      out_params: (wo, bo) with wo: [n_last, 1], bo: [1, 1].
      block_b: batch tile size (static; rounded up to a multiple of 128).

    Returns:
      [B, 1] float32 output.
    """
    x = jnp.asarray(x, jnp.float32)
    hidden_params = tuple((jnp.asarray(w, jnp.float32), jnp.asarray(b, jnp.float32))
                          for (w, b) in hidden_params)
    wo = jnp.asarray(out_params[0], jnp.float32)   # [n_last, 1]
    bo = jnp.asarray(out_params[1], jnp.float32)   # [1, 1]

    B, dim = x.shape
    n_hidden = len(hidden_params)

    # Batch tile: multiple of 128 so the batch-in-lanes head store is lane-dense
    # (also a multiple of 8 for the x block's sublane dim).  No padding of x:
    # the edge block's OOB rows are garbage whose outputs land in masked
    # (out-of-bounds) output columns, so they never reach HBM.
    tb = max(128, _round_up(min(block_b, B), 128))
    n_steps = pl.cdiv(B, tb)

    # Head in batch-in-lanes layout: wo^T padded from (1, n_last) up to one
    # sublane tile (8, n_last); rows 1..7 are zero (discarded).
    wo_t = jnp.pad(wo.T, ((0, _HEAD_ROWS - 1), (0, 0)))    # (8, n_last)
    bo_p = jnp.pad(bo, ((0, _HEAD_ROWS - 1), (0, 0)))      # (8, 1)

    # BlockSpecs: x tiled over batch rows, output tiled over batch lanes;
    # weights & biases VMEM-resident (constant block index -> no re-DMA).
    x_spec = pl.BlockSpec((tb, dim), lambda i: (i, 0))
    out_spec = pl.BlockSpec((_HEAD_ROWS, tb), lambda i: (0, i))

    def resident(a):
        return pl.BlockSpec(a.shape, lambda i: (0,) * a.ndim)

    flat_params = []
    in_specs = [x_spec]
    for (w, b) in hidden_params:
        flat_params += [w, b]
        in_specs += [resident(w), resident(b)]
    flat_params += [wo_t, bo_p]
    in_specs += [resident(wo_t), resident(bo_p)]

    # VMEM budget.  Weights counted x2: the default pipeline still allocates two
    # buffers per input even though the constant index_map means no re-DMA
    # (see TODO above about Buffered(1)/bf16 once hidden dims scale up).
    weight_bytes = sum(int(p.size) * _F32_BYTES for p in flat_params)
    widths = [dim] + [w.shape[1] for (w, _) in hidden_params]
    io_bytes = 2 * (tb * dim + _HEAD_ROWS * tb) * _F32_BYTES   # double-buffered x/out tiles
    act_bytes = 2 * tb * max(widths) * _F32_BYTES              # live activations
    vmem_limit = 2 * weight_bytes + io_bytes + act_bytes + (4 << 20)
    vmem_limit = int(min(max(vmem_limit, 8 << 20), 48 << 20))

    # Advisory cost estimate for XLA scheduling around the custom call
    # (bytes now reflect the small batch-in-lanes writeback).
    layer_dims = widths + [_HEAD_ROWS]
    flops = 2 * B * sum(layer_dims[i] * layer_dims[i + 1]
                        for i in range(len(layer_dims) - 1))
    bytes_accessed = (B * dim + _HEAD_ROWS * B) * _F32_BYTES + weight_bytes
    cost = pl.CostEstimate(flops=flops, transcendentals=0,
                           bytes_accessed=bytes_accessed)

    out = pl.pallas_call(
        _make_mlp_kernel(n_hidden),
        out_shape=jax.ShapeDtypeStruct((_HEAD_ROWS, B), jnp.float32),
        grid=(n_steps,),
        in_specs=in_specs,
        out_specs=out_spec,
        compiler_params=pltpu.CompilerParams(
            # "parallel" enables multi-TC sharding where available (v7x);
            # no-op on single-TC v5e/v6e.  pltpu.CORE_PARALLEL is the explicit
            # form if profiling shows the grid is not being split on v7x.
            dimension_semantics=("parallel",),
            vmem_limit_bytes=vmem_limit,
        ),
        cost_estimate=cost,
    )(x, *flat_params)

    # Row 0 of the (8, B) output is the real head; reshape to [B, 1].
    return out[0][:, None]


def init_params(key, dim, n1, n2, n3):
    """Deterministic synthetic parameters. Weights are [in, out] (PyTorch W.T)."""
    ks = jax.random.split(key, 8)

    def lin(kw, kb, fan_in, fan_out):
        bound = 1.0 / jnp.sqrt(jnp.float32(fan_in))
        w = jax.random.uniform(kw, (fan_in, fan_out), jnp.float32, -bound, bound)
        b = jax.random.uniform(kb, (1, fan_out), jnp.float32, -bound, bound)
        return w, b

    w1, b1 = lin(ks[0], ks[1], dim, n1)
    w2, b2 = lin(ks[2], ks[3], n1, n2)
    w3, b3 = lin(ks[4], ks[5], n2, n3)
    wo, bo = lin(ks[6], ks[7], n3, 1)
    return ((w1, b1), (w2, b2), (w3, b3)), (wo, bo)


if __name__ == "__main__":
    # nl = 3 variant; dim = 171 matches the module spec.  B = 300 with
    # block_b = 128 exercises a multi-tile batch grid (3 steps) including a
    # non-divisible edge block handled by Pallas write masking (no jnp.pad).
    B, DIM, N1, N2, N3 = 300, 171, 32, 32, 32

    key = jax.random.PRNGKey(0)
    kx, kp = jax.random.split(key)
    x = jax.random.normal(kx, (B, DIM), dtype=jnp.float32)
    hidden_params, out_params = init_params(kp, DIM, N1, N2, N3)

    y = net_dropout_forward(x, hidden_params, out_params, block_b=128)
    jax.block_until_ready(y)

    # Sanity check against a plain-JAX reference of the same forward pass.
    h = x
    for (w, b) in hidden_params:
        h = jnp.maximum(h @ w + b, 0.0)
    y_ref = h @ out_params[0] + out_params[1]

    assert y.shape == (B, 1)
    assert jnp.allclose(y, y_ref, atol=1e-4, rtol=1e-4)

    print("KERNEL_OK")
</pallas_src>

<mosaic_0001>
module attributes {stable_mosaic.version = 11 : i64} {
  func.func @kernel(%arg0: i32, %arg1: memref<128x171xf32, #tpu.memory_space<vmem>>, %arg2: memref<171x32xf32, #tpu.memory_space<vmem>>, %arg3: memref<1x32xf32, #tpu.memory_space<vmem>>, %arg4: memref<32x32xf32, #tpu.memory_space<vmem>>, %arg5: memref<1x32xf32, #tpu.memory_space<vmem>>, %arg6: memref<32x32xf32, #tpu.memory_space<vmem>>, %arg7: memref<1x32xf32, #tpu.memory_space<vmem>>, %arg8: memref<8x32xf32, #tpu.memory_space<vmem>>, %arg9: memref<8x1xf32, #tpu.memory_space<vmem>>, %arg10: memref<8x128xf32, #tpu.memory_space<vmem>>) attributes {dimension_semantics = [#tpu.dimension_semantics<parallel>], iteration_bounds = array<i64: 3>, scalar_prefetch = 0 : i64, scratch_operands = 0 : i64, tpu.core_type = #tpu.core_type<tc>, window_params = [{transform_indices = @transform_0, window_bounds = array<i64: 128, 171>}, {pipeline_mode = #tpu.pipeline_mode<synchronous>, transform_indices = @transform_1, window_bounds = array<i64: 171, 32>}, {pipeline_mode = #tpu.pipeline_mode<synchronous>, transform_indices = @transform_2, window_bounds = array<i64: 1, 32>}, {pipeline_mode = #tpu.pipeline_mode<synchronous>, transform_indices = @transform_3, window_bounds = array<i64: 32, 32>}, {pipeline_mode = #tpu.pipeline_mode<synchronous>, transform_indices = @transform_4, window_bounds = array<i64: 1, 32>}, {pipeline_mode = #tpu.pipeline_mode<synchronous>, transform_indices = @transform_5, window_bounds = array<i64: 32, 32>}, {pipeline_mode = #tpu.pipeline_mode<synchronous>, transform_indices = @transform_6, window_bounds = array<i64: 1, 32>}, {pipeline_mode = #tpu.pipeline_mode<synchronous>, transform_indices = @transform_7, window_bounds = array<i64: 8, 32>}, {pipeline_mode = #tpu.pipeline_mode<synchronous>, transform_indices = @transform_8, window_bounds = array<i64: 8, 1>}, {transform_indices = @transform_9, window_bounds = array<i64: 8, 128>}]} {
    %c0 = arith.constant 0 : index
    %c0_0 = arith.constant 0 : index
    %0 = vector.load %arg1[%c0, %c0_0] : memref<128x171xf32, #tpu.memory_space<vmem>>, vector<128x171xf32>
    %c0_1 = arith.constant 0 : index
    %c0_2 = arith.constant 0 : index
    %1 = vector.load %arg2[%c0_1, %c0_2] : memref<171x32xf32, #tpu.memory_space<vmem>>, vector<171x32xf32>
    %cst = arith.constant dense<0.000000e+00> : vector<128x32xf32>
    %2 = tpu.matmul %0, %1, %cst {dimension_numbers = #tpu.dot_dimension_numbers<[1], [0], [0], [1], [0, 0, 1, 1], [], []>} : vector<128x171xf32>, vector<171x32xf32>, vector<128x32xf32> -> vector<128x32xf32>
    %c0_3 = arith.constant 0 : index
    %c0_4 = arith.constant 0 : index
    %3 = vector.load %arg3[%c0_3, %c0_4] : memref<1x32xf32, #tpu.memory_space<vmem>>, vector<1x32xf32>
    %4 = vector.broadcast %3 : vector<1x32xf32> to vector<128x32xf32>
    %5 = arith.addf %2, %4 : vector<128x32xf32>
    %cst_5 = arith.constant 0.000000e+00 : f32
    %6 = vector.broadcast %cst_5 : f32 to vector<128x32xf32>
    %7 = arith.maximumf %5, %6 : vector<128x32xf32>
    %c0_6 = arith.constant 0 : index
    %c0_7 = arith.constant 0 : index
    %8 = vector.load %arg4[%c0_6, %c0_7] : memref<32x32xf32, #tpu.memory_space<vmem>>, vector<32x32xf32>
    %cst_8 = arith.constant dense<0.000000e+00> : vector<128x32xf32>
    %9 = tpu.matmul %7, %8, %cst_8 {dimension_numbers = #tpu.dot_dimension_numbers<[1], [0], [0], [1], [0, 0, 1, 1], [], []>} : vector<128x32xf32>, vector<32x32xf32>, vector<128x32xf32> -> vector<128x32xf32>
    %c0_9 = arith.constant 0 : index
    %c0_10 = arith.constant 0 : index
    %10 = vector.load %arg5[%c0_9, %c0_10] : memref<1x32xf32, #tpu.memory_space<vmem>>, vector<1x32xf32>
    %11 = vector.broadcast %10 : vector<1x32xf32> to vector<128x32xf32>
    %12 = arith.addf %9, %11 : vector<128x32xf32>
    %cst_11 = arith.constant 0.000000e+00 : f32
    %13 = vector.broadcast %cst_11 : f32 to vector<128x32xf32>
    %14 = arith.maximumf %12, %13 : vector<128x32xf32>
    %c0_12 = arith.constant 0 : index
    %c0_13 = arith.constant 0 : index
    %15 = vector.load %arg6[%c0_12, %c0_13] : memref<32x32xf32, #tpu.memory_space<vmem>>, vector<32x32xf32>
    %cst_14 = arith.constant dense<0.000000e+00> : vector<128x32xf32>
    %16 = tpu.matmul %14, %15, %cst_14 {dimension_numbers = #tpu.dot_dimension_numbers<[1], [0], [0], [1], [0, 0, 1, 1], [], []>} : vector<128x32xf32>, vector<32x32xf32>, vector<128x32xf32> -> vector<128x32xf32>
    %c0_15 = arith.constant 0 : index
    %c0_16 = arith.constant 0 : index
    %17 = vector.load %arg7[%c0_15, %c0_16] : memref<1x32xf32, #tpu.memory_space<vmem>>, vector<1x32xf32>
    %18 = vector.broadcast %17 : vector<1x32xf32> to vector<128x32xf32>
    %19 = arith.addf %16, %18 : vector<128x32xf32>
    %cst_17 = arith.constant 0.000000e+00 : f32
    %20 = vector.broadcast %cst_17 : f32 to vector<128x32xf32>
    %21 = arith.maximumf %19, %20 : vector<128x32xf32>
    %c0_18 = arith.constant 0 : index
    %c0_19 = arith.constant 0 : index
    %22 = vector.load %arg8[%c0_18, %c0_19] : memref<8x32xf32, #tpu.memory_space<vmem>>, vector<8x32xf32>
    %cst_20 = arith.constant dense<0.000000e+00> : vector<8x128xf32>
    %23 = tpu.matmul %22, %21, %cst_20 {dimension_numbers = #tpu.dot_dimension_numbers<[1], [1], [0], [0], [0, 0, 1, 0], [], []>} : vector<8x32xf32>, vector<128x32xf32>, vector<8x128xf32> -> vector<8x128xf32>
    %c0_21 = arith.constant 0 : index
    %c0_22 = arith.constant 0 : index
    %24 = vector.load %arg9[%c0_21, %c0_22] : memref<8x1xf32, #tpu.memory_space<vmem>>, vector<8x1xf32>
    %25 = vector.broadcast %24 : vector<8x1xf32> to vector<8x128xf32>
    %26 = arith.addf %23, %25 : vector<8x128xf32>
    %c0_23 = arith.constant 0 : index
    %c0_24 = arith.constant 0 : index
    %27 = vector.load %arg10[%c0_23, %c0_24] : memref<8x128xf32, #tpu.memory_space<vmem>>, vector<8x128xf32>
    tpu.vector_store %arg10[%c0_23, %c0_24], %26 {strides = array<i32>} : memref<8x128xf32, #tpu.memory_space<vmem>>, vector<8x128xf32>,
    return
  }
  func.func @transform_0(%arg0: i32) -> (i32, i32) {
    %c0_i32 = arith.constant 0 : i32
    %c0_i32_0 = arith.constant 0 : i32
    return %arg0, %c0_i32 : i32, i32
  }
  func.func @transform_1(%arg0: i32) -> (i32, i32) {
    %c0_i32 = arith.constant 0 : i32
    %c0_i32_0 = arith.constant 0 : i32
    %c0_i32_1 = arith.constant 0 : i32
    return %c0_i32, %c0_i32_0 : i32, i32
  }
  func.func @transform_2(%arg0: i32) -> (i32, i32) {
    %c0_i32 = arith.constant 0 : i32
    %c0_i32_0 = arith.constant 0 : i32
    %c0_i32_1 = arith.constant 0 : i32
    return %c0_i32, %c0_i32_0 : i32, i32
  }
  func.func @transform_3(%arg0: i32) -> (i32, i32) {
    %c0_i32 = arith.constant 0 : i32
    %c0_i32_0 = arith.constant 0 : i32
    %c0_i32_1 = arith.constant 0 : i32
    return %c0_i32, %c0_i32_0 : i32, i32
  }
  func.func @transform_4(%arg0: i32) -> (i32, i32) {
    %c0_i32 = arith.constant 0 : i32
    %c0_i32_0 = arith.constant 0 : i32
    %c0_i32_1 = arith.constant 0 : i32
    return %c0_i32, %c0_i32_0 : i32, i32
  }
  func.func @transform_5(%arg0: i32) -> (i32, i32) {
    %c0_i32 = arith.constant 0 : i32
    %c0_i32_0 = arith.constant 0 : i32
    %c0_i32_1 = arith.constant 0 : i32
    return %c0_i32, %c0_i32_0 : i32, i32
  }
  func.func @transform_6(%arg0: i32) -> (i32, i32) {
    %c0_i32 = arith.constant 0 : i32
    %c0_i32_0 = arith.constant 0 : i32
    %c0_i32_1 = arith.constant 0 : i32
    return %c0_i32, %c0_i32_0 : i32, i32
  }
  func.func @transform_7(%arg0: i32) -> (i32, i32) {
    %c0_i32 = arith.constant 0 : i32
    %c0_i32_0 = arith.constant 0 : i32
    %c0_i32_1 = arith.constant 0 : i32
    return %c0_i32, %c0_i32_0 : i32, i32
  }
  func.func @transform_8(%arg0: i32) -> (i32, i32) {
    %c0_i32 = arith.constant 0 : i32
    %c0_i32_0 = arith.constant 0 : i32
    %c0_i32_1 = arith.constant 0 : i32
    return %c0_i32, %c0_i32_0 : i32, i32
  }
  func.func @transform_9(%arg0: i32) -> (i32, i32) {
    %c0_i32 = arith.constant 0 : i32
    %c0_i32_0 = arith.constant 0 : i32
    return %c0_i32, %arg0 : i32, i32
  }
}

</mosaic_0001>

<llo_original>
// kernel: net_dropout_forward.1
$region0: #{net_dropout_forward.1}
  #allocation0 [shape = 'u32[]', space=smem, size = 0x4, offset = 0x4, fixed_abs, tag = 'smem constant byte address 0x4 - core index']
  #allocation1 [shape = 'u32[144,128]{1,0:T(1,128)}', space=vmem, size = 0x12000, scoped, tag = 'internal scratch']
  %s0 = inlined_call_operand.vmem [shape: f32[300,171], index: 0, kind: input, shape index: {}]
  %s1 = inlined_call_operand.vmem [shape: f32[171,32], index: 1, kind: input, shape index: {}]
  %s2 = inlined_call_operand.vmem [shape: f32[1,32], index: 2, kind: input, shape index: {}]
  %s3 = inlined_call_operand.vmem [shape: f32[32,32], index: 3, kind: input, shape index: {}]
  %s4 = inlined_call_operand.vmem [shape: f32[1,32], index: 4, kind: input, shape index: {}]
  %s5 = inlined_call_operand.vmem [shape: f32[32,32], index: 5, kind: input, shape index: {}]
  %s6 = inlined_call_operand.vmem [shape: f32[1,32], index: 6, kind: input, shape index: {}]
  %s7 = inlined_call_operand.vmem [shape: f32[8,32], index: 7, kind: input, shape index: {}]
  %s8 = inlined_call_operand.vmem [shape: f32[8,1], index: 8, kind: input, shape index: {}]
  %s9 = inlined_call_operand.vmem [shape: f32[8,300], index: 9, kind: output, shape index: {}]
  %s10 = sld [smem:[#allocation0]]
  $region69: #{net_dropout_forward.1} parent=0
    _
  %s12 = ssub.s32 1, %s10
  %s13 = scalar_select 0, %s12, %s10
  loop: start=0, step=1, limit=5
  $region2: #{net_dropout_forward.1} parent=0 // loop_pre_header
    _
  $region3: #{net_dropout_forward.1} parent=0 // loop_header
    %s15 = sphi 0, %s19
    %p16 = scmp.ge.s32.totalorder %s15, 5
    %s25 = sphi 0, %s27
    %s28 = sphi 0, %s25
    %s29 = sphi 0, %s28
    %s45 = sphi 0, %s29
    %s49 = sphi 0, %s49
    %s51 = sphi 0, %s49
    %s52 = sphi 0, %s51
    %s66 = sphi 0, %s52
    %s70 = sphi 0, %s70
    %s72 = sphi 0, %s70
    %s73 = sphi 0, %s72
    %s87 = sphi 0, %s73
    %s91 = sphi 0, %s91
    %s93 = sphi 0, %s91
    %s94 = sphi 0, %s93
    %s108 = sphi 0, %s94
    %s112 = sphi 0, %s112
    %s114 = sphi 0, %s112
    %s115 = sphi 0, %s114
    %s129 = sphi 0, %s115
    %s133 = sphi 0, %s133
    %s135 = sphi 0, %s133
    %s136 = sphi 0, %s135
    %s150 = sphi 0, %s136
    %s154 = sphi 0, %s154
    %s156 = sphi 0, %s154
    %s157 = sphi 0, %s156
    %s171 = sphi 0, %s157
    %s175 = sphi 0, %s175
    %s177 = sphi 0, %s175
    %s178 = sphi 0, %s177
    %s192 = sphi 0, %s178
    %s196 = sphi 0, %s196
    %s198 = sphi 0, %s196
    %s199 = sphi 0, %s198
    %s213 = sphi 0, %s199
    %s219 = sphi 0, %s221
    %s222 = sphi 0, %s219
    %s223 = sphi 0, %s222
    %s239 = sphi 0, %s223
  $region4: #{net_dropout_forward.1} parent=0 // loop_header_branch
    %18 = sbr.rel (%p16) target = $region8
  $region5: #{net_dropout_forward.1} parent=0 // loop_body
    %s20 = ssub.s32 %s15, 1
    %s21 = ssub.s32 %s15, 2
    %s22 = sadd.s32 %s15, 1
    %s23 = ssub.s32 %s15, %s22
    %p24 = scmp.eq.s32.totalorder %s23, 0
    %s26 = sadd.s32 %s25, 1
    %s27 = scalar_select %p24, %s25, %s26
    %p30 = pneg %p24
    %p31 = scmp.eq.s32.totalorder %s15, 2
    %p32 = por %p30, %p31
    %p33 = scmp.ne.s32.totalorder %s25, %s28
    %p34 = scmp.eq.s32.totalorder %s15, 0
    %p35 = por %p33, %p34
    %p36 = scmp.ne.s32.totalorder %s25, %s28
    %p37 = scmp.eq.s32.totalorder %s20, 2
    %p38 = por %p36, %p37
    %p39 = scmp.ne.s32.totalorder %s28, %s29
    %p40 = scmp.eq.s32.totalorder %s20, 0
    %p41 = por %p39, %p40
    %p42 = scmp.ne.s32.totalorder %s28, %s29
    %p43 = scmp.eq.s32.totalorder %s21, 2
    %p44 = por %p42, %p43
    %p46 = scmp.ne.s32.totalorder %s29, %s45
    %p47 = scmp.eq.s32.totalorder %s21, 0
    %p48 = por %p46, %p47
    %s50 = sadd.s32 %s49, 1
    %p53 = scmp.eq.s32.totalorder %s15, 2
    %p54 = scmp.ne.s32.totalorder %s49, %s51
    %p55 = scmp.eq.s32.totalorder %s15, 0
    %p56 = por %p54, %p55
    %p57 = scmp.ne.s32.totalorder %s49, %s51
    %p58 = scmp.eq.s32.totalorder %s20, 2
    %p59 = por %p57, %p58
    %p60 = scmp.ne.s32.totalorder %s51, %s52
    %p61 = scmp.eq.s32.totalorder %s20, 0
    %p62 = por %p60, %p61
    %p63 = scmp.ne.s32.totalorder %s51, %s52
    %p64 = scmp.eq.s32.totalorder %s21, 2
    %p65 = por %p63, %p64
    %p67 = scmp.ne.s32.totalorder %s52, %s66
    %p68 = scmp.eq.s32.totalorder %s21, 0
    %p69 = por %p67, %p68
    %s71 = sadd.s32 %s70, 1
    %p74 = scmp.eq.s32.totalorder %s15, 2
    %p75 = scmp.ne.s32.totalorder %s70, %s72
    %p76 = scmp.eq.s32.totalorder %s15, 0
    %p77 = por %p75, %p76
    %p78 = scmp.ne.s32.totalorder %s70, %s72
    %p79 = scmp.eq.s32.totalorder %s20, 2
    %p80 = por %p78, %p79
    %p81 = scmp.ne.s32.totalorder %s72, %s73
    %p82 = scmp.eq.s32.totalorder %s20, 0
    %p83 = por %p81, %p82
    %p84 = scmp.ne.s32.totalorder %s72, %s73
    %p85 = scmp.eq.s32.totalorder %s21, 2
    %p86 = por %p84, %p85
    %p88 = scmp.ne.s32.totalorder %s73, %s87
    %p89 = scmp.eq.s32.totalorder %s21, 0
    %p90 = por %p88, %p89
    %s92 = sadd.s32 %s91, 1
    %p95 = scmp.eq.s32.totalorder %s15, 2
    %p96 = scmp.ne.s32.totalorder %s91, %s93
    %p97 = scmp.eq.s32.totalorder %s15, 0
    %p98 = por %p96, %p97
    %p99 = scmp.ne.s32.totalorder %s91, %s93
    %p100 = scmp.eq.s32.totalorder %s20, 2
    %p101 = por %p99, %p100
    %p102 = scmp.ne.s32.totalorder %s93, %s94
    %p103 = scmp.eq.s32.totalorder %s20, 0
    %p104 = por %p102, %p103
    %p105 = scmp.ne.s32.totalorder %s93, %s94
    %p106 = scmp.eq.s32.totalorder %s21, 2
    %p107 = por %p105, %p106
    %p109 = scmp.ne.s32.totalorder %s94, %s108
    %p110 = scmp.eq.s32.totalorder %s21, 0
    %p111 = por %p109, %p110
    %s113 = sadd.s32 %s112, 1
    %p116 = scmp.eq.s32.totalorder %s15, 2
    %p117 = scmp.ne.s32.totalorder %s112, %s114
    %p118 = scmp.eq.s32.totalorder %s15, 0
    %p119 = por %p117, %p118
    %p120 = scmp.ne.s32.totalorder %s112, %s114
    %p121 = scmp.eq.s32.totalorder %s20, 2
    %p122 = por %p120, %p121
    %p123 = scmp.ne.s32.totalorder %s114, %s115
    %p124 = scmp.eq.s32.totalorder %s20, 0
    %p125 = por %p123, %p124
    %p126 = scmp.ne.s32.totalorder %s114, %s115
    %p127 = scmp.eq.s32.totalorder %s21, 2
    %p128 = por %p126, %p127
    %p130 = scmp.ne.s32.totalorder %s115, %s129
    %p131 = scmp.eq.s32.totalorder %s21, 0
    %p132 = por %p130, %p131
    %s134 = sadd.s32 %s133, 1
    %p137 = scmp.eq.s32.totalorder %s15, 2
    %p138 = scmp.ne.s32.totalorder %s133, %s135
    %p139 = scmp.eq.s32.totalorder %s15, 0
    %p140 = por %p138, %p139
    %p141 = scmp.ne.s32.totalorder %s133, %s135
    %p142 = scmp.eq.s32.totalorder %s20, 2
    %p143 = por %p141, %p142
    %p144 = scmp.ne.s32.totalorder %s135, %s136
    %p145 = scmp.eq.s32.totalorder %s20, 0
    %p146 = por %p144, %p145
    %p147 = scmp.ne.s32.totalorder %s135, %s136
    %p148 = scmp.eq.s32.totalorder %s21, 2
    %p149 = por %p147, %p148
    %p151 = scmp.ne.s32.totalorder %s136, %s150
    %p152 = scmp.eq.s32.totalorder %s21, 0
    %p153 = por %p151, %p152
    %s155 = sadd.s32 %s154, 1
    %p158 = scmp.eq.s32.totalorder %s15, 2
    %p159 = scmp.ne.s32.totalorder %s154, %s156
    %p160 = scmp.eq.s32.totalorder %s15, 0
    %p161 = por %p159, %p160
    %p162 = scmp.ne.s32.totalorder %s154, %s156
    %p163 = scmp.eq.s32.totalorder %s20, 2
    %p164 = por %p162, %p163
    %p165 = scmp.ne.s32.totalorder %s156, %s157
    %p166 = scmp.eq.s32.totalorder %s20, 0
    %p167 = por %p165, %p166
    %p168 = scmp.ne.s32.totalorder %s156, %s157
    %p169 = scmp.eq.s32.totalorder %s21, 2
    %p170 = por %p168, %p169
    %p172 = scmp.ne.s32.totalorder %s157, %s171
    %p173 = scmp.eq.s32.totalorder %s21, 0
    %p174 = por %p172, %p173
    %s176 = sadd.s32 %s175, 1
    %p179 = scmp.eq.s32.totalorder %s15, 2
    %p180 = scmp.ne.s32.totalorder %s175, %s177
    %p181 = scmp.eq.s32.totalorder %s15, 0
    %p182 = por %p180, %p181
    %p183 = scmp.ne.s32.totalorder %s175, %s177
    %p184 = scmp.eq.s32.totalorder %s20, 2
    %p185 = por %p183, %p184
    %p186 = scmp.ne.s32.totalorder %s177, %s178
    %p187 = scmp.eq.s32.totalorder %s20, 0
    %p188 = por %p186, %p187
    %p189 = scmp.ne.s32.totalorder %s177, %s178
    %p190 = scmp.eq.s32.totalorder %s21, 2
    %p191 = por %p189, %p190
    %p193 = scmp.ne.s32.totalorder %s178, %s192
    %p194 = scmp.eq.s32.totalorder %s21, 0
    %p195 = por %p193, %p194
    %s197 = sadd.s32 %s196, 1
    %p200 = scmp.eq.s32.totalorder %s15, 2
    %p201 = scmp.ne.s32.totalorder %s196, %s198
    %p202 = scmp.eq.s32.totalorder %s15, 0
    %p203 = por %p201, %p202
    %p204 = scmp.ne.s32.totalorder %s196, %s198
    %p205 = scmp.eq.s32.totalorder %s20, 2
    %p206 = por %p204, %p205
    %p207 = scmp.ne.s32.totalorder %s198, %s199
    %p208 = scmp.eq.s32.totalorder %s20, 0
    %p209 = por %p207, %p208
    %p210 = scmp.ne.s32.totalorder %s198, %s199
    %p211 = scmp.eq.s32.totalorder %s21, 2
    %p212 = por %p210, %p211
    %p214 = scmp.ne.s32.totalorder %s199, %s213
    %p215 = scmp.eq.s32.totalorder %s21, 0
    %p216 = por %p214, %p215
    %s217 = ssub.s32 %s15, %s22
    %p218 = scmp.eq.s32.totalorder %s217, 0
    %s220 = sadd.s32 %s219, 1
    %s221 = scalar_select %p218, %s219, %s220
    %p224 = pneg %p218
    %p225 = scmp.eq.s32.totalorder %s15, 2
    %p226 = por %p224, %p225
    %p227 = scmp.ne.s32.totalorder %s219, %s222
    %p228 = scmp.eq.s32.totalorder %s15, 0
    %p229 = por %p227, %p228
    %p230 = scmp.ne.s32.totalorder %s219, %s222
    %p231 = scmp.eq.s32.totalorder %s20, 2
    %p232 = por %p230, %p231
    %p233 = scmp.ne.s32.totalorder %s222, %s223
    %p234 = scmp.eq.s32.totalorder %s20, 0
    %p235 = por %p233, %p234
    %p236 = scmp.ne.s32.totalorder %s222, %s223
    %p237 = scmp.eq.s32.totalorder %s21, 2
    %p238 = por %p236, %p237
    %p240 = scmp.ne.s32.totalorder %s223, %s239
    %p241 = scmp.eq.s32.totalorder %s21, 0
    %p242 = por %p240, %p241
    %p243 = scmp.le.s32.totalorder 1, %s15
    %p244 = scmp.lt.s32.totalorder %s15, 4
    %p245 = pnand %p243, %p244
    %p246 = pneg %p245
    // Predicated region
    $region9: #{net_dropout_forward.1} parent=5 // pred_check
      _
    $region10: #{net_dropout_forward.1} parent=5 // pred_check_branch
      %248 = sbr.rel (%p245) target = $region12
    $region11: #{net_dropout_forward.1} parent=5 // pred_region
      %s249 = ssub.s32 %s15, 1
      // Predicated region
      $region13: #{net_dropout_forward.1} parent=11 // pred_check
        %p250 = pneg %p62
      $region14: #{net_dropout_forward.1} parent=11 // pred_check_branch
        %252 = sbr.rel (%p250) target = $region16
      $region15: #{net_dropout_forward.1} parent=11 // pred_region
        _
      $region16: #{net_dropout_forward.1} parent=11 // pred_fallthru
        _
      // Predicated region
      $region17: #{net_dropout_forward.1} parent=11 // pred_check
        %p253 = pneg %p83
      $region18: #{net_dropout_forward.1} parent=11 // pred_check_branch
        %255 = sbr.rel (%p253) target = $region20
      $region19: #{net_dropout_forward.1} parent=11 // pred_region
        _
      $region20: #{net_dropout_forward.1} parent=11 // pred_fallthru
        _
      // Predicated region
      $region21: #{net_dropout_forward.1} parent=11 // pred_check
        %p256 = pneg %p104
      $region22: #{net_dropout_forward.1} parent=11 // pred_check_branch
        %258 = sbr.rel (%p256) target = $region24
      $region23: #{net_dropout_forward.1} parent=11 // pred_region
        _
      $region24: #{net_dropout_forward.1} parent=11 // pred_fallthru
        _
      // Predicated region
      $region25: #{net_dropout_forward.1} parent=11 // pred_check
        %p259 = pneg %p125
      $region26: #{net_dropout_forward.1} parent=11 // pred_check_branch
        %261 = sbr.rel (%p259) target = $region28
      $region27: #{net_dropout_forward.1} parent=11 // pred_region
        _
      $region28: #{net_dropout_forward.1} parent=11 // pred_fallthru
        _
      // Predicated region
      $region29: #{net_dropout_forward.1} parent=11 // pred_check
        %p262 = pneg %p146
      $region30: #{net_dropout_forward.1} parent=11 // pred_check_branch
        %264 = sbr.rel (%p262) target = $region32
      $region31: #{net_dropout_forward.1} parent=11 // pred_region
        _
      $region32: #{net_dropout_forward.1} parent=11 // pred_fallthru
        _
      // Predicated region
      $region33: #{net_dropout_forward.1} parent=11 // pred_check
        %p265 = pneg %p167
      $region34: #{net_dropout_forward.1} parent=11 // pred_check_branch
        %267 = sbr.rel (%p265) target = $region36
      $region35: #{net_dropout_forward.1} parent=11 // pred_region
        _
      $region36: #{net_dropout_forward.1} parent=11 // pred_fallthru
        _
      // Predicated region
      $region37: #{net_dropout_forward.1} parent=11 // pred_check
        %p268 = pneg %p188
      $region38: #{net_dropout_forward.1} parent=11 // pred_check_branch
        %270 = sbr.rel (%p268) target = $region40
      $region39: #{net_dropout_forward.1} parent=11 // pred_region
        _
      $region40: #{net_dropout_forward.1} parent=11 // pred_fallthru
        _
      // Predicated region
      $region41: #{net_dropout_forward.1} parent=11 // pred_check
        %p271 = pneg %p209
      $region42: #{net_dropout_forward.1} parent=11 // pred_check_branch
        %273 = sbr.rel (%p271) target = $region44
      $region43: #{net_dropout_forward.1} parent=11 // pred_region
        _
      $region44: #{net_dropout_forward.1} parent=11 // pred_fallthru
        _
    $region12: #{net_dropout_forward.1} parent=5 // pred_fallthru
      _
    %p274 = scmp.lt.s32.totalorder %s15, 3
    // Predicated region
    $region45: #{net_dropout_forward.1} parent=5 // pred_check
      %p275 = pneg %p274
    $region46: #{net_dropout_forward.1} parent=5 // pred_check_branch
      %277 = sbr.rel (%p275) target = $region48
    $region47: #{net_dropout_forward.1} parent=5 // pred_region
      // Predicated region
      $region49: #{net_dropout_forward.1} parent=47 // pred_check
        %p278 = pneg %p35
      $region50: #{net_dropout_forward.1} parent=47 // pred_check_branch
        %280 = sbr.rel (%p278) target = $region52
      $region51: #{net_dropout_forward.1} parent=47 // pred_region
        %s281 = smul.u32 16, %s15
        %s282 = ssub.s32 38, %s281
        %p283 = scmp.lt.s32.totalorder %s282, 16
        %s284 = scalar_select %p283, %s282, 16
        %s285 = smul.u32 128, %s284
        %s286 = smul.u32 %s285, 2
        %p287 = scmp.lt.s32.totalorder %s281, 37
        %s288 = scalar_select %p287, %s281, 37
        %s289 = smul.addr %s288, 2
        %s290 = smul.addr %s289, 8
        %s291 = scalar_lea.vmem %s0, %s290
        %s292 = smul.u32 16, %s15
        %s293 = ssub.s32 38, %s292
        %p294 = scmp.lt.s32.totalorder %s293, 16
        %s295 = scalar_select %p294, %s293, 16
        %s296 = smul.u32 128, %s295
        %s297 = smul.u32 %s296, 2
      $region52: #{net_dropout_forward.1} parent=47 // pred_fallthru
        _
    $region48: #{net_dropout_forward.1} parent=5 // pred_fallthru
      _
    %p298 = scmp.le.s32.totalorder 1, %s15
    %p299 = scmp.lt.s32.totalorder %s15, 4
    %p300 = pnand %p298, %p299
    %p301 = pneg %p300
    // Predicated region
    $region53: #{net_dropout_forward.1} parent=5 // pred_check
      _
    $region54: #{net_dropout_forward.1} parent=5 // pred_check_branch
      %303 = sbr.rel (%p300) target = $region56
    $region55: #{net_dropout_forward.1} parent=5 // pred_region
      %s304 = ssub.s32 %s15, 1
      %s305 = smul.u32 16, %s20
      %s306 = ssub.s32 38, %s305
      %p307 = scmp.lt.s32.totalorder %s306, 16
      %s308 = scalar_select %p307, %s306, 16
      %s309 = smul.u32 128, %s308
      %s310 = smul.u32 %s309, 2
      %p311 = scmp.lt.s32.totalorder %s305, 37
      %s312 = scalar_select %p311, %s305, 37
      %s313 = smul.addr %s312, 2
      %s314 = smul.addr %s313, 8
      %s315 = scalar_lea.vmem %s0, %s314
      %p316 = pneg %p41
      %p317 = pneg %p38
      %p318 = pneg %p62
      %p319 = pneg %p59
      %p320 = pneg %p83
      %p321 = pneg %p80
      %p322 = pneg %p104
      %p323 = pneg %p101
      %p324 = pneg %p125
      %p325 = pneg %p122
      %p326 = pneg %p146
      %p327 = pneg %p143
      %p328 = pneg %p167
      %p329 = pneg %p164
      %p330 = pneg %p188
      %p331 = pneg %p185
      %p332 = pneg %p209
      %p333 = pneg %p206
      %p334 = pneg %p235
      %p335 = pneg %p232
      %p336 = scmp.lt.s32.totalorder %s20, 2
      %s337 = scalar_select %p336, %s20, 2
      %s338 = smul.addr %s337, 8
      %s339 = scalar_lea.vmem %s9, %s338
      %s340 = smul.u32 16, %s20
      %s341 = ssub.s32 38, %s340
      %p342 = scmp.lt.s32.totalorder %s341, 16
      %s343 = scalar_select %p342, %s341, 16
      %s344 = smul.u32 128, %s343
      %s345 = smul.u32 %s344, 2
      %p346 = scmp.lt.s32.totalorder %s340, 37
      %s347 = scalar_select %p346, %s340, 37
      %s348 = smul.addr %s347, 2
      %s349 = smul.addr %s348, 8
      %s350 = scalar_lea.vmem %s0, %s349
      %s351 = smul.u32 16, %s20
      %s352 = ssub.s32 38, %s351
      %p353 = scmp.lt.s32.totalorder %s352, 16
      %s354 = scalar_select %p353, %s352, 16
      %s355 = smul.u32 128, %s354
      %s356 = smul.u32 %s355, 2
      %p357 = scmp.lt.s32.totalorder %s20, 2
      %s358 = scalar_select %p357, %s20, 2
      %s359 = smul.addr %s358, 8
      %s360 = scalar_lea.vmem %s9, %s359
      %v361 = vld [vmem:[%s350] sm:$0xff]
      %v362 = vld [vmem:[%s350 + $0x8] sm:$0xff]
      %v363 = vld [vmem:[%s350 + $0x10] sm:$0xff]
      %v364 = vld [vmem:[%s350 + $0x18] sm:$0xff]
      %v365 = vld [vmem:[%s350 + $0x20] sm:$0xff]
      %v366 = vld [vmem:[%s350 + $0x28] sm:$0xff]
      %v367 = vld [vmem:[%s350 + $0x30] sm:$0xff]
      %v368 = vld [vmem:[%s350 + $0x38] sm:$0xff]
      %v369 = vld [vmem:[%s350 + $0x40] sm:$0xff]
      %v370 = vld [vmem:[%s350 + $0x48] sm:$0xff]
      %v371 = vld [vmem:[%s350 + $0x50] sm:$0xff]
      %v372 = vld [vmem:[%s350 + $0x58] sm:$0xff]
      %v373 = vld [vmem:[%s350 + $0x60] sm:$0xff]
      %v374 = vld [vmem:[%s350 + $0x68] sm:$0xff]
      %v375 = vld [vmem:[%s350 + $0x70] sm:$0xff]
      %v376 = vld [vmem:[%s350 + $0x78] sm:$0xff]
      %v377 = vld [vmem:[%s350 + $0x80] sm:$0xff]
      %v378 = vld [vmem:[%s350 + $0x88] sm:$0xff]
      %v379 = vld [vmem:[%s350 + $0x90] sm:$0xff]
      %v380 = vld [vmem:[%s350 + $0x98] sm:$0xff]
      %v381 = vld [vmem:[%s350 + $0xa0] sm:$0xff]
      %v382 = vld [vmem:[%s350 + $0xa8] sm:$0xff]
      %v383 = vld [vmem:[%s350 + $0xb0] sm:$0xff]
      %v384 = vld [vmem:[%s350 + $0xb8] sm:$0xff]
      %v385 = vld [vmem:[%s350 + $0xc0] sm:$0xff]
      %v386 = vld [vmem:[%s350 + $0xc8] sm:$0xff]
      %v387 = vld [vmem:[%s350 + $0xd0] sm:$0xff]
      %v388 = vld [vmem:[%s350 + $0xd8] sm:$0xff]
      %v389 = vld [vmem:[%s350 + $0xe0] sm:$0xff]
      %v390 = vld [vmem:[%s350 + $0xe8] sm:$0xff]
      %v391 = vld [vmem:[%s350 + $0xf0] sm:$0xff]
      %v392 = vld [vmem:[%s350 + $0xf8] sm:$0xff]
      %v393 = vld [vmem:[%s1] sm:$0xff]
      %v394 = vld [vmem:[%s1 + $0x8] sm:$0xff]
      %v395 = vld [vmem:[%s1 + $0x10] sm:$0xff]
      %v396 = vld [vmem:[%s1 + $0x18] sm:$0xff]
      %v397 = vld [vmem:[%s1 + $0x20] sm:$0xff]
      %v398 = vld [vmem:[%s1 + $0x28] sm:$0xff]
      %v399 = vld [vmem:[%s1 + $0x30] sm:$0xff]
      %v400 = vld [vmem:[%s1 + $0x38] sm:$0xff]
      %v401 = vld [vmem:[%s1 + $0x40] sm:$0xff]
      %v402 = vld [vmem:[%s1 + $0x48] sm:$0xff]
      %v403 = vld [vmem:[%s1 + $0x50] sm:$0xff]
      %v404 = vld [vmem:[%s1 + $0x58] sm:$0xff]
      %v405 = vld [vmem:[%s1 + $0x60] sm:$0xff]
      %v406 = vld [vmem:[%s1 + $0x68] sm:$0xff]
      %v407 = vld [vmem:[%s1 + $0x70] sm:$0xff]
      %v408 = vld [vmem:[%s1 + $0x78] sm:$0xff]
      %v409 = vld [vmem:[%s1 + $0x80] sm:$0xff]
      %v410 = vld [vmem:[%s1 + $0x88] sm:$0xff]
      %v411 = vld [vmem:[%s1 + $0x90] sm:$0xff]
      %v412 = vld [vmem:[%s1 + $0x98] sm:$0xff]
      %v413 = vld [vmem:[%s1 + $0xa0] sm:$0xff]
      %v414 = vld [vmem:[%s1 + $0xa8] sm:$0x7]
      %v415 = vld [vmem:[%s2] sm:$0x1]
      %v417 = vlaneseq
      %v418 = vshrl.u32 %v417, 7
      %v419 = vsub.s32 0, %v418
      %v420 = vrot.slane %v415, %v419
      %vm422 = vcmask 351232
      %v424 = vsel %vm422, %v362, 0
      %v427 = vsel %vm422, %v364, 0
      %v430 = vsel %vm422, %v366, 0
      %v433 = vsel %vm422, %v368, 0
      %v436 = vsel %vm422, %v370, 0
      %v439 = vsel %vm422, %v372, 0
      %v442 = vsel %vm422, %v374, 0
      %v445 = vsel %vm422, %v376, 0
      %v448 = vsel %vm422, %v378, 0
      %v451 = vsel %vm422, %v380, 0
      %v454 = vsel %vm422, %v382, 0
      %v457 = vsel %vm422, %v384, 0
      %v460 = vsel %vm422, %v386, 0
      %v463 = vsel %vm422, %v388, 0
      %v466 = vsel %vm422, %v390, 0
      %v469 = vsel %vm422, %v392, 0
      %vm471 = vcmask 1042432
      %v473 = vsel %vm471, %v414, 0
      %475 = vmatprep.subr.mxu0 0.0
      %476 = vmatpush1.msra.mxu0 %v408
      %477 = vmatprep.subr.mxu0 0.0
      %478 = vmatpush1.msra.mxu0 %v407
      %479 = vmatprep.subr.mxu0 0.0
      %480 = vmatpush1.msra.mxu0 %v406
      %481 = vmatprep.subr.mxu0 0.0
      %482 = vmatpush1.msra.mxu0 %v405
      %483 = vmatprep.subr.mxu0 0.0
      %484 = vmatpush1.msra.mxu0 %v404
      %485 = vmatprep.subr.mxu0 0.0
      %486 = vmatpush1.msra.mxu0 %v403
      %487 = vmatprep.subr.mxu0 0.0
      %488 = vmatpush1.msra.mxu0 %v402
      %489 = vmatprep.subr.mxu0 0.0
      %490 = vmatpush1.msra.mxu0 %v401
      %491 = vmatprep.subr.mxu0 0.0
      %492 = vmatpush1.msra.mxu0 %v400
      %493 = vmatprep.subr.mxu0 0.0
      %494 = vmatpush1.msra.mxu0 %v399
      %495 = vmatprep.subr.mxu0 0.0
      %496 = vmatpush1.msra.mxu0 %v398
      %497 = vmatprep.subr.mxu0 0.0
      %498 = vmatpush1.msra.mxu0 %v397
      %499 = vmatprep.subr.mxu0 0.0
      %500 = vmatpush1.msra.mxu0 %v396
      %501 = vmatprep.subr.mxu0 0.0
      %502 = vmatpush1.msra.mxu0 %v395
      %503 = vmatprep.subr.mxu0 0.0
      %504 = vmatpush1.msra.mxu0 %v394
      %505 = vmatprep.subr.mxu0 0.0
      %506 = vmatpush1.msra.mxu0 %v393
      %507 = vmatprep.subr.mxu0 0.0
      %508 = vmatpush2.msra.mxu0 0.0
      %509 = vmatprep.subr.mxu0 0.0
      %510 = vmatpush2.msra.mxu0 0.0
      %511 = vmatprep.subr.mxu0 0.0
      %512 = vmatpush2.msra.mxu0 0.0
      %513 = vmatprep.subr.mxu0 0.0
      %514 = vmatpush2.msra.mxu0 0.0
      %515 = vmatprep.subr.mxu0 0.0
      %516 = vmatpush2.msra.mxu0 0.0
      %517 = vmatprep.subr.mxu0 0.0
      %518 = vmatpush2.msra.mxu0 0.0
      %519 = vmatprep.subr.mxu0 0.0
      %520 = vmatpush2.msra.mxu0 0.0
      %521 = vmatprep.subr.mxu0 0.0
      %522 = vmatpush2.msra.mxu0 0.0
      %523 = vmatprep.subr.mxu0 0.0
      %524 = vmatpush2.msra.mxu0 0.0
      %525 = vmatprep.subr.mxu0 0.0
      %526 = vmatpush2.msra.mxu0 0.0
      %527 = vmatprep.subr.mxu0 0.0
      %528 = vmatpush2.msra.mxu0 %v473
      %529 = vmatprep.subr.mxu0 0.0
      %530 = vmatpush2.msra.mxu0 %v413
      %531 = vmatprep.subr.mxu0 0.0
      %532 = vmatpush2.msra.mxu0 %v412
      %533 = vmatprep.subr.mxu0 0.0
      %534 = vmatpush2.msra.mxu0 %v411
      %535 = vmatprep.subr.mxu0 0.0
      %536 = vmatpush2.msra.mxu0 %v410
      %537 = vmatprep.subr.mxu0 0.0
      %538 = vmatpush2.msra.mxu0 %v409
      %539 = vmatprep.mubr.f32.mxu0 %v424
      %540 = vmatmul.mubr.f32.gmra.mxu0 %v361
      %v541 = vpop.f32.mrf.mxu0
      %v542 = vadd.f32 %v420, %v541
      %v543 = vpop.f32.mrf.mxu0
      %544 = vmatprep.mubr.f32.mxu0 %v427
      %545 = vmatmul.mubr.f32.gmra.mxu0 %v363
      %v546 = vpop.f32.mrf.mxu0
      %v547 = vadd.f32 %v420, %v546
      %v548 = vpop.f32.mrf.mxu0
      %549 = vmatprep.mubr.f32.mxu0 %v430
      %550 = vmatmul.mubr.f32.gmra.mxu0 %v365
      %v551 = vpop.f32.mrf.mxu0
      %v552 = vadd.f32 %v420, %v551
      %v553 = vpop.f32.mrf.mxu0
      %554 = vmatprep.mubr.f32.mxu0 %v433
      %555 = vmatmul.mubr.f32.gmra.mxu0 %v367
      %v556 = vpop.f32.mrf.mxu0
      %v557 = vadd.f32 %v420, %v556
      %v558 = vpop.f32.mrf.mxu0
      %559 = vmatprep.mubr.f32.mxu0 %v436
      %560 = vmatmul.mubr.f32.gmra.mxu0 %v369
      %v561 = vpop.f32.mrf.mxu0
      %v562 = vadd.f32 %v420, %v561
      %v563 = vpop.f32.mrf.mxu0
      %564 = vmatprep.mubr.f32.mxu0 %v439
      %565 = vmatmul.mubr.f32.gmra.mxu0 %v371
      %v566 = vpop.f32.mrf.mxu0
      %v567 = vadd.f32 %v420, %v566
      %v568 = vpop.f32.mrf.mxu0
      %569 = vmatprep.mubr.f32.mxu0 %v442
      %570 = vmatmul.mubr.f32.gmra.mxu0 %v373
      %v571 = vpop.f32.mrf.mxu0
      %v572 = vadd.f32 %v420, %v571
      %v573 = vpop.f32.mrf.mxu0
      %574 = vmatprep.mubr.f32.mxu0 %v445
      %575 = vmatmul.mubr.f32.gmra.mxu0 %v375
      %v576 = vpop.f32.mrf.mxu0
      %v577 = vadd.f32 %v420, %v576
      %v578 = vpop.f32.mrf.mxu0
      %579 = vmatprep.mubr.f32.mxu0 %v448
      %580 = vmatmul.mubr.f32.gmra.mxu0 %v377
      %v581 = vpop.f32.mrf.mxu0
      %v582 = vadd.f32 %v420, %v581
      %v583 = vpop.f32.mrf.mxu0
      %584 = vmatprep.mubr.f32.mxu0 %v451
      %585 = vmatmul.mubr.f32.gmra.mxu0 %v379
      %v586 = vpop.f32.mrf.mxu0
      %v587 = vadd.f32 %v420, %v586
      %v588 = vpop.f32.mrf.mxu0
      %589 = vmatprep.mubr.f32.mxu0 %v454
      %590 = vmatmul.mubr.f32.gmra.mxu0 %v381
      %v591 = vpop.f32.mrf.mxu0
      %v592 = vadd.f32 %v420, %v591
      %v593 = vpop.f32.mrf.mxu0
      %594 = vmatprep.mubr.f32.mxu0 %v457
      %595 = vmatmul.mubr.f32.gmra.mxu0 %v383
      %v596 = vpop.f32.mrf.mxu0
      %v597 = vadd.f32 %v420, %v596
      %v598 = vpop.f32.mrf.mxu0
      %599 = vmatprep.mubr.f32.mxu0 %v460
      %600 = vmatmul.mubr.f32.gmra.mxu0 %v385
      %v601 = vpop.f32.mrf.mxu0
      %v602 = vadd.f32 %v420, %v601
      %v603 = vpop.f32.mrf.mxu0
      %604 = vmatprep.mubr.f32.mxu0 %v463
      %605 = vmatmul.mubr.f32.gmra.mxu0 %v387
      %v606 = vpop.f32.mrf.mxu0
      %v607 = vadd.f32 %v420, %v606
      %v608 = vpop.f32.mrf.mxu0
      %609 = vmatprep.mubr.f32.mxu0 %v466
      %610 = vmatmul.mubr.f32.gmra.mxu0 %v389
      %v611 = vpop.f32.mrf.mxu0
      %v612 = vadd.f32 %v420, %v611
      %v613 = vpop.f32.mrf.mxu0
      %614 = vmatprep.mubr.f32.mxu0 %v469
      %615 = vmatmul.mubr.f32.gmra.mxu0 %v391
      %v616 = vpop.f32.mrf.mxu0
      %v617 = vadd.f32 %v420, %v616
      %v618 = vpop.f32.mrf.mxu0
      %619 = vdwg.mxu0
      %v620 = vmax.f32 %v542, 0.0
      %v621 = vmax.f32 %v547, 0.0
      %v622 = vmax.f32 %v552, 0.0
      %v623 = vmax.f32 %v557, 0.0
      %v624 = vmax.f32 %v562, 0.0
      %v625 = vmax.f32 %v567, 0.0
      %v626 = vmax.f32 %v572, 0.0
      %v627 = vmax.f32 %v577, 0.0
      %v628 = vmax.f32 %v582, 0.0
      %v629 = vmax.f32 %v587, 0.0
      %v630 = vmax.f32 %v592, 0.0
      %v631 = vmax.f32 %v597, 0.0
      %v632 = vmax.f32 %v602, 0.0
      %v633 = vmax.f32 %v607, 0.0
      %v634 = vmax.f32 %v612, 0.0
      %v635 = vmax.f32 %v617, 0.0
      %v636 = vld [vmem:[%s3] sm:$0xff]
      %v637 = vld [vmem:[%s3 + $0x8] sm:$0xff]
      %v638 = vld [vmem:[%s3 + $0x10] sm:$0xff]
      %v639 = vld [vmem:[%s3 + $0x18] sm:$0xff]
      %v640 = vld [vmem:[%s4] sm:$0x1]
      %v642 = vlaneseq
      %v643 = vshrl.u32 %v642, 7
      %v644 = vsub.s32 0, %v643
      %v645 = vrot.slane %v640, %v644
      %vm647 = vcmask 261120
      %v649 = vsel %vm647, %v620, 0
      %v652 = vsel %vm647, %v621, 0
      %v655 = vsel %vm647, %v622, 0
      %v658 = vsel %vm647, %v623, 0
      %v661 = vsel %vm647, %v624, 0
      %v664 = vsel %vm647, %v625, 0
      %v667 = vsel %vm647, %v626, 0
      %v670 = vsel %vm647, %v627, 0
      %v673 = vsel %vm647, %v628, 0
      %v676 = vsel %vm647, %v629, 0
      %v679 = vsel %vm647, %v630, 0
      %v682 = vsel %vm647, %v631, 0
      %v685 = vsel %vm647, %v632, 0
      %v688 = vsel %vm647, %v633, 0
      %v691 = vsel %vm647, %v634, 0
      %v694 = vsel %vm647, %v635, 0
      %696 = vmatprep.subr.mxu0 0.0
      %697 = vmatpush1.msra.mxu0 0.0
      %698 = vmatprep.subr.mxu0 0.0
      %699 = vmatpush1.msra.mxu0 0.0
      %700 = vmatprep.subr.mxu0 0.0
      %701 = vmatpush1.msra.mxu0 0.0
      %702 = vmatprep.subr.mxu0 0.0
      %703 = vmatpush1.msra.mxu0 0.0
      %704 = vmatprep.subr.mxu0 0.0
      %705 = vmatpush1.msra.mxu0 0.0
      %706 = vmatprep.subr.mxu0 0.0
      %707 = vmatpush1.msra.mxu0 0.0
      %708 = vmatprep.subr.mxu0 0.0
      %709 = vmatpush1.msra.mxu0 0.0
      %710 = vmatprep.subr.mxu0 0.0
      %711 = vmatpush1.msra.mxu0 0.0
      %712 = vmatprep.subr.mxu0 0.0
      %713 = vmatpush1.msra.mxu0 0.0
      %714 = vmatprep.subr.mxu0 0.0
      %715 = vmatpush1.msra.mxu0 0.0
      %716 = vmatprep.subr.mxu0 0.0
      %717 = vmatpush1.msra.mxu0 0.0
      %718 = vmatprep.subr.mxu0 0.0
      %719 = vmatpush1.msra.mxu0 0.0
      %720 = vmatprep.subr.mxu0 0.0
      %721 = vmatpush1.msra.mxu0 %v639
      %722 = vmatprep.subr.mxu0 0.0
      %723 = vmatpush1.msra.mxu0 %v638
      %724 = vmatprep.subr.mxu0 0.0
      %725 = vmatpush1.msra.mxu0 %v637
      %726 = vmatprep.subr.mxu0 0.0
      %727 = vmatpush1.msra.mxu0 %v636
      %728 = vmatprep.subr.mxu0 0.0
      %729 = vmatpush2.msra.mxu0 0.0
      %730 = vmatprep.subr.mxu0 0.0
      %731 = vmatpush2.msra.mxu0 0.0
      %732 = vmatprep.subr.mxu0 0.0
      %733 = vmatpush2.msra.mxu0 0.0
      %734 = vmatprep.subr.mxu0 0.0
      %735 = vmatpush2.msra.mxu0 0.0
      %736 = vmatprep.subr.mxu0 0.0
      %737 = vmatpush2.msra.mxu0 0.0
      %738 = vmatprep.subr.mxu0 0.0
      %739 = vmatpush2.msra.mxu0 0.0
      %740 = vmatprep.subr.mxu0 0.0
      %741 = vmatpush2.msra.mxu0 0.0
      %742 = vmatprep.subr.mxu0 0.0
      %743 = vmatpush2.msra.mxu0 0.0
      %744 = vmatprep.subr.mxu0 0.0
      %745 = vmatpush2.msra.mxu0 0.0
      %746 = vmatprep.subr.mxu0 0.0
      %747 = vmatpush2.msra.mxu0 0.0
      %748 = vmatprep.subr.mxu0 0.0
      %749 = vmatpush2.msra.mxu0 0.0
      %750 = vmatprep.subr.mxu0 0.0
      %751 = vmatpush2.msra.mxu0 0.0
      %752 = vmatprep.subr.mxu0 0.0
      %753 = vmatpush2.msra.mxu0 0.0
      %754 = vmatprep.subr.mxu0 0.0
      %755 = vmatpush2.msra.mxu0 0.0
      %756 = vmatprep.subr.mxu0 0.0
      %757 = vmatpush2.msra.mxu0 0.0
      %758 = vmatprep.subr.mxu0 0.0
      %759 = vmatpush2.msra.mxu0 0.0
      %760 = vmatprep.mubr.f32.mxu0 0.0
      %761 = vmatmul.mubr.f32.gmra.mxu0 %v649
      %v762 = vpop.f32.mrf.mxu0
      %v763 = vadd.f32 %v645, %v762
      %v764 = vpop.f32.mrf.mxu0
      %765 = vmatprep.mubr.f32.mxu0 0.0
      %766 = vmatmul.mubr.f32.gmra.mxu0 %v652
      %v767 = vpop.f32.mrf.mxu0
      %v768 = vadd.f32 %v645, %v767
      %v769 = vpop.f32.mrf.mxu0
      %770 = vmatprep.mubr.f32.mxu0 0.0
      %771 = vmatmul.mubr.f32.gmra.mxu0 %v655
      %v772 = vpop.f32.mrf.mxu0
      %v773 = vadd.f32 %v645, %v772
      %v774 = vpop.f32.mrf.mxu0
      %775 = vmatprep.mubr.f32.mxu0 0.0
      %776 = vmatmul.mubr.f32.gmra.mxu0 %v658
      %v777 = vpop.f32.mrf.mxu0
      %v778 = vadd.f32 %v645, %v777
      %v779 = vpop.f32.mrf.mxu0
      %780 = vmatprep.mubr.f32.mxu0 0.0
      %781 = vmatmul.mubr.f32.gmra.mxu0 %v661
      %v782 = vpop.f32.mrf.mxu0
      %v783 = vadd.f32 %v645, %v782
      %v784 = vpop.f32.mrf.mxu0
      %785 = vmatprep.mubr.f32.mxu0 0.0
      %786 = vmatmul.mubr.f32.gmra.mxu0 %v664
      %v787 = vpop.f32.mrf.mxu0
      %v788 = vadd.f32 %v645, %v787
      %v789 = vpop.f32.mrf.mxu0
      %790 = vmatprep.mubr.f32.mxu0 0.0
      %791 = vmatmul.mubr.f32.gmra.mxu0 %v667
      %v792 = vpop.f32.mrf.mxu0
      %v793 = vadd.f32 %v645, %v792
      %v794 = vpop.f32.mrf.mxu0
      %795 = vmatprep.mubr.f32.mxu0 0.0
      %796 = vmatmul.mubr.f32.gmra.mxu0 %v670
      %v797 = vpop.f32.mrf.mxu0
      %v798 = vadd.f32 %v645, %v797
      %v799 = vpop.f32.mrf.mxu0
      %800 = vmatprep.mubr.f32.mxu0 0.0
      %801 = vmatmul.mubr.f32.gmra.mxu0 %v673
      %v802 = vpop.f32.mrf.mxu0
      %v803 = vadd.f32 %v645, %v802
      %v804 = vpop.f32.mrf.mxu0
      %805 = vmatprep.mubr.f32.mxu0 0.0
      %806 = vmatmul.mubr.f32.gmra.mxu0 %v676
      %v807 = vpop.f32.mrf.mxu0
      %v808 = vadd.f32 %v645, %v807
      %v809 = vpop.f32.mrf.mxu0
      %810 = vmatprep.mubr.f32.mxu0 0.0
      %811 = vmatmul.mubr.f32.gmra.mxu0 %v679
      %v812 = vpop.f32.mrf.mxu0
      %v813 = vadd.f32 %v645, %v812
      %v814 = vpop.f32.mrf.mxu0
      %815 = vmatprep.mubr.f32.mxu0 0.0
      %816 = vmatmul.mubr.f32.gmra.mxu0 %v682
      %v817 = vpop.f32.mrf.mxu0
      %v818 = vadd.f32 %v645, %v817
      %v819 = vpop.f32.mrf.mxu0
      %820 = vmatprep.mubr.f32.mxu0 0.0
      %821 = vmatmul.mubr.f32.gmra.mxu0 %v685
      %v822 = vpop.f32.mrf.mxu0
      %v823 = vadd.f32 %v645, %v822
      %v824 = vpop.f32.mrf.mxu0
      %825 = vmatprep.mubr.f32.mxu0 0.0
      %826 = vmatmul.mubr.f32.gmra.mxu0 %v688
      %v827 = vpop.f32.mrf.mxu0
      %v828 = vadd.f32 %v645, %v827
      %v829 = vpop.f32.mrf.mxu0
      %830 = vmatprep.mubr.f32.mxu0 0.0
      %831 = vmatmul.mubr.f32.gmra.mxu0 %v691
      %v832 = vpop.f32.mrf.mxu0
      %v833 = vadd.f32 %v645, %v832
      %v834 = vpop.f32.mrf.mxu0
      %835 = vmatprep.mubr.f32.mxu0 0.0
      %836 = vmatmul.mubr.f32.gmra.mxu0 %v694
      %v837 = vpop.f32.mrf.mxu0
      %v838 = vadd.f32 %v645, %v837
      %v839 = vpop.f32.mrf.mxu0
      %840 = vdwg.mxu0
      %v841 = vmax.f32 %v763, 0.0
      %v842 = vmax.f32 %v768, 0.0
      %v843 = vmax.f32 %v773, 0.0
      %v844 = vmax.f32 %v778, 0.0
      %v845 = vmax.f32 %v783, 0.0
      %v846 = vmax.f32 %v788, 0.0
      %v847 = vmax.f32 %v793, 0.0
      %v848 = vmax.f32 %v798, 0.0
      %v849 = vmax.f32 %v803, 0.0
      %v850 = vmax.f32 %v808, 0.0
      %v851 = vmax.f32 %v813, 0.0
      %v852 = vmax.f32 %v818, 0.0
      %v853 = vmax.f32 %v823, 0.0
      %v854 = vmax.f32 %v828, 0.0
      %v855 = vmax.f32 %v833, 0.0
      %v856 = vmax.f32 %v838, 0.0
      %v857 = vld [vmem:[%s5] sm:$0xff]
      %v858 = vld [vmem:[%s5 + $0x8] sm:$0xff]
      %v859 = vld [vmem:[%s5 + $0x10] sm:$0xff]
      %v860 = vld [vmem:[%s5 + $0x18] sm:$0xff]
      %v861 = vld [vmem:[%s6] sm:$0x1]
      %v863 = vlaneseq
      %v864 = vshrl.u32 %v863, 7
      %v865 = vsub.s32 0, %v864
      %v866 = vrot.slane %v861, %v865
      %v869 = vsel %vm647, %v841, 0
      %v872 = vsel %vm647, %v842, 0
      %v875 = vsel %vm647, %v843, 0
      %v878 = vsel %vm647, %v844, 0
      %v881 = vsel %vm647, %v845, 0
      %v884 = vsel %vm647, %v846, 0
      %v887 = vsel %vm647, %v847, 0
      %v890 = vsel %vm647, %v848, 0
      %v893 = vsel %vm647, %v849, 0
      %v896 = vsel %vm647, %v850, 0
      %v899 = vsel %vm647, %v851, 0
      %v902 = vsel %vm647, %v852, 0
      %v905 = vsel %vm647, %v853, 0
      %v908 = vsel %vm647, %v854, 0
      %v911 = vsel %vm647, %v855, 0
      %v914 = vsel %vm647, %v856, 0
      %916 = vmatprep.subr.mxu0 0.0
      %917 = vmatpush1.msra.mxu0 0.0
      %918 = vmatprep.subr.mxu0 0.0
      %919 = vmatpush1.msra.mxu0 0.0
      %920 = vmatprep.subr.mxu0 0.0
      %921 = vmatpush1.msra.mxu0 0.0
      %922 = vmatprep.subr.mxu0 0.0
      %923 = vmatpush1.msra.mxu0 0.0
      %924 = vmatprep.subr.mxu0 0.0
      %925 = vmatpush1.msra.mxu0 0.0
      %926 = vmatprep.subr.mxu0 0.0
      %927 = vmatpush1.msra.mxu0 0.0
      %928 = vmatprep.subr.mxu0 0.0
      %929 = vmatpush1.msra.mxu0 0.0
      %930 = vmatprep.subr.mxu0 0.0
      %931 = vmatpush1.msra.mxu0 0.0
      %932 = vmatprep.subr.mxu0 0.0
      %933 = vmatpush1.msra.mxu0 0.0
      %934 = vmatprep.subr.mxu0 0.0
      %935 = vmatpush1.msra.mxu0 0.0
      %936 = vmatprep.subr.mxu0 0.0
      %937 = vmatpush1.msra.mxu0 0.0
      %938 = vmatprep.subr.mxu0 0.0
      %939 = vmatpush1.msra.mxu0 0.0
      %940 = vmatprep.subr.mxu0 0.0
      %941 = vmatpush1.msra.mxu0 %v860
      %942 = vmatprep.subr.mxu0 0.0
      %943 = vmatpush1.msra.mxu0 %v859
      %944 = vmatprep.subr.mxu0 0.0
      %945 = vmatpush1.msra.mxu0 %v858
      %946 = vmatprep.subr.mxu0 0.0
      %947 = vmatpush1.msra.mxu0 %v857
      %948 = vmatprep.subr.mxu0 0.0
      %949 = vmatpush2.msra.mxu0 0.0
      %950 = vmatprep.subr.mxu0 0.0
      %951 = vmatpush2.msra.mxu0 0.0
      %952 = vmatprep.subr.mxu0 0.0
      %953 = vmatpush2.msra.mxu0 0.0
      %954 = vmatprep.subr.mxu0 0.0
      %955 = vmatpush2.msra.mxu0 0.0
      %956 = vmatprep.subr.mxu0 0.0
      %957 = vmatpush2.msra.mxu0 0.0
      %958 = vmatprep.subr.mxu0 0.0
      %959 = vmatpush2.msra.mxu0 0.0
      %960 = vmatprep.subr.mxu0 0.0
      %961 = vmatpush2.msra.mxu0 0.0
      %962 = vmatprep.subr.mxu0 0.0
      %963 = vmatpush2.msra.mxu0 0.0
      %964 = vmatprep.subr.mxu0 0.0
      %965 = vmatpush2.msra.mxu0 0.0
      %966 = vmatprep.subr.mxu0 0.0
      %967 = vmatpush2.msra.mxu0 0.0
      %968 = vmatprep.subr.mxu0 0.0
      %969 = vmatpush2.msra.mxu0 0.0
      %970 = vmatprep.subr.mxu0 0.0
      %971 = vmatpush2.msra.mxu0 0.0
      %972 = vmatprep.subr.mxu0 0.0
      %973 = vmatpush2.msra.mxu0 0.0
      %974 = vmatprep.subr.mxu0 0.0
      %975 = vmatpush2.msra.mxu0 0.0
      %976 = vmatprep.subr.mxu0 0.0
      %977 = vmatpush2.msra.mxu0 0.0
      %978 = vmatprep.subr.mxu0 0.0
      %979 = vmatpush2.msra.mxu0 0.0
      %980 = vmatprep.mubr.f32.mxu0 0.0
      %981 = vmatmul.mubr.f32.gmra.mxu0 %v869
      %v982 = vpop.f32.mrf.mxu0
      %v983 = vadd.f32 %v866, %v982
      %v984 = vpop.f32.mrf.mxu0
      %985 = vmatprep.mubr.f32.mxu0 0.0
      %986 = vmatmul.mubr.f32.gmra.mxu0 %v872
      %v987 = vpop.f32.mrf.mxu0
      %v988 = vadd.f32 %v866, %v987
      %v989 = vpop.f32.mrf.mxu0
      %990 = vmatprep.mubr.f32.mxu0 0.0
      %991 = vmatmul.mubr.f32.gmra.mxu0 %v875
      %v992 = vpop.f32.mrf.mxu0
      %v993 = vadd.f32 %v866, %v992
      %v994 = vpop.f32.mrf.mxu0
      %995 = vmatprep.mubr.f32.mxu0 0.0
      %996 = vmatmul.mubr.f32.gmra.mxu0 %v878
      %v997 = vpop.f32.mrf.mxu0
      %v998 = vadd.f32 %v866, %v997
      %v999 = vpop.f32.mrf.mxu0
      %1000 = vmatprep.mubr.f32.mxu0 0.0
      %1001 = vmatmul.mubr.f32.gmra.mxu0 %v881
      %v1002 = vpop.f32.mrf.mxu0
      %v1003 = vadd.f32 %v866, %v1002
      %v1004 = vpop.f32.mrf.mxu0
      %1005 = vmatprep.mubr.f32.mxu0 0.0
      %1006 = vmatmul.mubr.f32.gmra.mxu0 %v884
      %v1007 = vpop.f32.mrf.mxu0
      %v1008 = vadd.f32 %v866, %v1007
      %v1009 = vpop.f32.mrf.mxu0
      %1010 = vmatprep.mubr.f32.mxu0 0.0
      %1011 = vmatmul.mubr.f32.gmra.mxu0 %v887
      %v1012 = vpop.f32.mrf.mxu0
      %v1013 = vadd.f32 %v866, %v1012
      %v1014 = vpop.f32.mrf.mxu0
      %1015 = vmatprep.mubr.f32.mxu0 0.0
      %1016 = vmatmul.mubr.f32.gmra.mxu0 %v890
      %v1017 = vpop.f32.mrf.mxu0
      %v1018 = vadd.f32 %v866, %v1017
      %v1019 = vpop.f32.mrf.mxu0
      %1020 = vmatprep.mubr.f32.mxu0 0.0
      %1021 = vmatmul.mubr.f32.gmra.mxu0 %v893
      %v1022 = vpop.f32.mrf.mxu0
      %v1023 = vadd.f32 %v866, %v1022
      %v1024 = vpop.f32.mrf.mxu0
      %1025 = vmatprep.mubr.f32.mxu0 0.0
      %1026 = vmatmul.mubr.f32.gmra.mxu0 %v896
      %v1027 = vpop.f32.mrf.mxu0
      %v1028 = vadd.f32 %v866, %v1027
      %v1029 = vpop.f32.mrf.mxu0
      %1030 = vmatprep.mubr.f32.mxu0 0.0
      %1031 = vmatmul.mubr.f32.gmra.mxu0 %v899
      %v1032 = vpop.f32.mrf.mxu0
      %v1033 = vadd.f32 %v866, %v1032
      %v1034 = vpop.f32.mrf.mxu0
      %1035 = vmatprep.mubr.f32.mxu0 0.0
      %1036 = vmatmul.mubr.f32.gmra.mxu0 %v902
      %v1037 = vpop.f32.mrf.mxu0
      %v1038 = vadd.f32 %v866, %v1037
      %v1039 = vpop.f32.mrf.mxu0
      %1040 = vmatprep.mubr.f32.mxu0 0.0
      %1041 = vmatmul.mubr.f32.gmra.mxu0 %v905
      %v1042 = vpop.f32.mrf.mxu0
      %v1043 = vadd.f32 %v866, %v1042
      %v1044 = vpop.f32.mrf.mxu0
      %1045 = vmatprep.mubr.f32.mxu0 0.0
      %1046 = vmatmul.mubr.f32.gmra.mxu0 %v908
      %v1047 = vpop.f32.mrf.mxu0
      %v1048 = vadd.f32 %v866, %v1047
      %v1049 = vpop.f32.mrf.mxu0
      %1050 = vmatprep.mubr.f32.mxu0 0.0
      %1051 = vmatmul.mubr.f32.gmra.mxu0 %v911
      %v1052 = vpop.f32.mrf.mxu0
      %v1053 = vadd.f32 %v866, %v1052
      %v1054 = vpop.f32.mrf.mxu0
      %1055 = vmatprep.mubr.f32.mxu0 0.0
      %1056 = vmatmul.mubr.f32.gmra.mxu0 %v914
      %v1057 = vpop.f32.mrf.mxu0
      %v1058 = vadd.f32 %v866, %v1057
      %v1059 = vpop.f32.mrf.mxu0
      %1060 = vdwg.mxu0
      %v1061 = vmax.f32 %v983, 0.0
      %v1062 = vmax.f32 %v988, 0.0
      %v1063 = vmax.f32 %v993, 0.0
      %v1064 = vmax.f32 %v998, 0.0
      %v1065 = vmax.f32 %v1003, 0.0
      %v1066 = vmax.f32 %v1008, 0.0
      %v1067 = vmax.f32 %v1013, 0.0
      %v1068 = vmax.f32 %v1018, 0.0
      %v1069 = vmax.f32 %v1023, 0.0
      %v1070 = vmax.f32 %v1028, 0.0
      %v1071 = vmax.f32 %v1033, 0.0
      %v1072 = vmax.f32 %v1038, 0.0
      %v1073 = vmax.f32 %v1043, 0.0
      %v1074 = vmax.f32 %v1048, 0.0
      %v1075 = vmax.f32 %v1053, 0.0
      %v1076 = vmax.f32 %v1058, 0.0
      %v1077 = vld [vmem:[%s7] sm:$0xff]
      %v1078 = vld [vmem:[%s8] sm:$0xff]
      %1080 = vset.pattern.permute.xlu0 0
      %1081 = vperm.xlu0 %1080, %v1078
      %v1082 = vpop.permute.xlu0 %1081
      %v1085 = vsel %vm647, %v1077, 0
      %v1088 = vsel %vm647, %v1061, 0
      %v1091 = vsel %vm647, %v1062, 0
      %v1094 = vsel %vm647, %v1063, 0
      %v1097 = vsel %vm647, %v1064, 0
      %v1100 = vsel %vm647, %v1065, 0
      %v1103 = vsel %vm647, %v1066, 0
      %v1106 = vsel %vm647, %v1067, 0
      %v1109 = vsel %vm647, %v1068, 0
      %v1112 = vsel %vm647, %v1069, 0
      %v1115 = vsel %vm647, %v1070, 0
      %v1118 = vsel %vm647, %v1071, 0
      %v1121 = vsel %vm647, %v1072, 0
      %v1124 = vsel %vm647, %v1073, 0
      %v1127 = vsel %vm647, %v1074, 0
      %v1130 = vsel %vm647, %v1075, 0
      %v1133 = vsel %vm647, %v1076, 0
      %1135 = vmatprep.subr.mxu0 0.0
      %1136 = vmatpush1.xpose.msra.mxu0 %v1133
      %1137 = vmatprep.subr.mxu0 0.0
      %1138 = vmatpush1.xpose.msra.mxu0 %v1130
      %1139 = vmatprep.subr.mxu0 0.0
      %1140 = vmatpush1.xpose.msra.mxu0 %v1127
      %1141 = vmatprep.subr.mxu0 0.0
      %1142 = vmatpush1.xpose.msra.mxu0 %v1124
      %1143 = vmatprep.subr.mxu0 0.0
      %1144 = vmatpush1.xpose.msra.mxu0 %v1121
      %1145 = vmatprep.subr.mxu0 0.0
      %1146 = vmatpush1.xpose.msra.mxu0 %v1118
      %1147 = vmatprep.subr.mxu0 0.0
      %1148 = vmatpush1.xpose.msra.mxu0 %v1115
      %1149 = vmatprep.subr.mxu0 0.0
      %1150 = vmatpush1.xpose.msra.mxu0 %v1112
      %1151 = vmatprep.subr.mxu0 0.0
      %1152 = vmatpush1.xpose.msra.mxu0 %v1109
      %1153 = vmatprep.subr.mxu0 0.0
      %1154 = vmatpush1.xpose.msra.mxu0 %v1106
      %1155 = vmatprep.subr.mxu0 0.0
      %1156 = vmatpush1.xpose.msra.mxu0 %v1103
      %1157 = vmatprep.subr.mxu0 0.0
      %1158 = vmatpush1.xpose.msra.mxu0 %v1100
      %1159 = vmatprep.subr.mxu0 0.0
      %1160 = vmatpush1.xpose.msra.mxu0 %v1097
      %1161 = vmatprep.subr.mxu0 0.0
      %1162 = vmatpush1.xpose.msra.mxu0 %v1094
      %1163 = vmatprep.subr.mxu0 0.0
      %1164 = vmatpush1.xpose.msra.mxu0 %v1091
      %1165 = vmatprep.subr.mxu0 0.0
      %1166 = vmatpush1.xpose.msra.mxu0 %v1088
      %1167 = vmatprep.subr.mxu0 0.0
      %1168 = vmatpush2.xpose.msra.mxu0 0.0
      %1169 = vmatprep.subr.mxu0 0.0
      %1170 = vmatpush2.xpose.msra.mxu0 0.0
      %1171 = vmatprep.subr.mxu0 0.0
      %1172 = vmatpush2.xpose.msra.mxu0 0.0
      %1173 = vmatprep.subr.mxu0 0.0
      %1174 = vmatpush2.xpose.msra.mxu0 0.0
      %1175 = vmatprep.subr.mxu0 0.0
      %1176 = vmatpush2.xpose.msra.mxu0 0.0
      %1177 = vmatprep.subr.mxu0 0.0
      %1178 = vmatpush2.xpose.msra.mxu0 0.0
      %1179 = vmatprep.subr.mxu0 0.0
      %1180 = vmatpush2.xpose.msra.mxu0 0.0
      %1181 = vmatprep.subr.mxu0 0.0
      %1182 = vmatpush2.xpose.msra.mxu0 0.0
      %1183 = vmatprep.subr.mxu0 0.0
      %1184 = vmatpush2.xpose.msra.mxu0 0.0
      %1185 = vmatprep.subr.mxu0 0.0
      %1186 = vmatpush2.xpose.msra.mxu0 0.0
      %1187 = vmatprep.subr.mxu0 0.0
      %1188 = vmatpush2.xpose.msra.mxu0 0.0
      %1189 = vmatprep.subr.mxu0 0.0
      %1190 = vmatpush2.xpose.msra.mxu0 0.0
      %1191 = vmatprep.subr.mxu0 0.0
      %1192 = vmatpush2.xpose.msra.mxu0 0.0
      %1193 = vmatprep.subr.mxu0 0.0
      %1194 = vmatpush2.xpose.msra.mxu0 0.0
      %1195 = vmatprep.subr.mxu0 0.0
      %1196 = vmatpush2.xpose.msra.mxu0 0.0
      %1197 = vmatprep.subr.mxu0 0.0
      %1198 = vmatpush2.xpose.msra.mxu0 0.0
      %1199 = vmatprep.mubr.f32.mxu0 0.0
      %1200 = vmatmul.mubr.f32.gmra.mxu0 %v1085
      %v1201 = vpop.f32.mrf.mxu0
      %v1202 = vadd.f32 %v1082, %v1201
      %v1203 = vpop.f32.mrf.mxu0
      %1204 = vdwg.mxu0
      %1205 = vst [vmem:[%s360] sm:$0xff] %v1202
      %p1206 = scmp.lt.s32.totalorder %s20, 2
      %s1207 = scalar_select %p1206, %s20, 2
      %s1208 = smul.addr %s1207, 8
      %s1209 = scalar_lea.vmem %s9, %s1208
      // Predicated region
      $region57: #{net_dropout_forward.1} parent=55 // pred_check
        %p1210 = pneg %p232
      $region58: #{net_dropout_forward.1} parent=55 // pred_check_branch
        %1212 = sbr.rel (%p1210) target = $region60
      $region59: #{net_dropout_forward.1} parent=55 // pred_region
        _
      $region60: #{net_dropout_forward.1} parent=55 // pred_fallthru
        _
    $region56: #{net_dropout_forward.1} parent=5 // pred_fallthru
      _
    %p1213 = scmp.le.s32.totalorder 2, %s15
    // Predicated region
    $region61: #{net_dropout_forward.1} parent=5 // pred_check
      %p1214 = pneg %p1213
    $region62: #{net_dropout_forward.1} parent=5 // pred_check_branch
      %1216 = sbr.rel (%p1214) target = $region64
    $region63: #{net_dropout_forward.1} parent=5 // pred_region
      %s1217 = ssub.s32 %s15, 2
      // Predicated region
      $region65: #{net_dropout_forward.1} parent=63 // pred_check
        %p1218 = pneg %p238
      $region66: #{net_dropout_forward.1} parent=63 // pred_check_branch
        %1220 = sbr.rel (%p1218) target = $region68
      $region67: #{net_dropout_forward.1} parent=63 // pred_region
        %p1221 = scmp.lt.s32.totalorder %s21, 2
        %s1222 = scalar_select %p1221, %s21, 2
        %s1223 = smul.addr %s1222, 8
        %s1224 = scalar_lea.vmem %s9, %s1223
      $region68: #{net_dropout_forward.1} parent=63 // pred_fallthru
        _
    $region64: #{net_dropout_forward.1} parent=5 // pred_fallthru
      _
  $region6: #{net_dropout_forward.1} parent=0 // loop_footer
    %s19 = sadd.s32 1, %s15
  $region7: #{net_dropout_forward.1} parent=0 // loop_footer_branch
    %14 = sbr.rel target = $region3
  $region8: #{net_dropout_forward.1} parent=0 // loop_exit
    _

</llo_original>
